<compile_context>
chip_gen: v6e
topology: v6e:2x2x1
jax: 0.10.0
libtpu: 0.0.40
codegen_flags: <defaults>
</compile_context>

<pallas_src>
import functools

import jax
import jax.numpy as jnp
from jax.experimental import pallas as pl
from jax.experimental.pallas import tpu as pltpu

HIDDEN = 256


def _round_up(x, m):
    return ((x + m - 1) // m) * m


def q_mlp_kernel(s_ref, a_ref, w1s_ref, w1a_ref, b1_ref, w2_ref, b2_ref,
                 w3_ref, b3_ref, out_ref, *, matmul_dtype):
    """One batch tile of: q = fc3(relu(fc2(relu(fc1(concat(s, a))))))."""
    # concat fused into fc1:  x @ W1 == s @ W1[:S, :] + a @ W1[S:, :]
    s = s_ref[...].astype(matmul_dtype)                       # (TB, S)
    a = a_ref[...].astype(matmul_dtype)                       # (TB, A)

    h1 = jnp.dot(s, w1s_ref[...], preferred_element_type=jnp.float32)
    h1 = h1 + jnp.dot(a, w1a_ref[...], preferred_element_type=jnp.float32)
    h1 = jnp.maximum(h1 + b1_ref[...], 0.0)                   # bias/ReLU in f32

    h2 = jnp.dot(h1.astype(matmul_dtype), w2_ref[...],
                 preferred_element_type=jnp.float32)
    h2 = jnp.maximum(h2 + b2_ref[...], 0.0)                   # (TB, 256)

    # fc3 (256 -> 1): VPU multiply + cross-lane reduction (MXU stays free),
    # b3 read as an SMEM scalar.
    q = jnp.sum(h2 * w3_ref[...], axis=-1, keepdims=True) + b3_ref[0, 0]
    out_ref[...] = q.astype(out_ref.dtype)                    # (TB, 1)


def q_forward(s, a, params, *, block_b=512, matmul_dtype=jnp.float32):
    """Forward pass of the Q network.  s: (..., S), a: (..., A) -> (B, 1)."""
    state_dim = params["state_dim"]
    action_dim = params["action_dim"]
    assert block_b % 8 == 0

    s2 = s.reshape(-1, state_dim).astype(jnp.float32)
    a2 = a.reshape(-1, action_dim).astype(jnp.float32)
    B = s2.shape[0]

    # Sublane-align the batch and pick a batch tile; pad rows with zeros
    # (padded rows are sliced off after the kernel).
    B8 = max(8, _round_up(B, 8))
    tb = min(block_b, B8)
    B_pad = _round_up(B8, tb)
    if B_pad != B:
        pad = B_pad - B
        s2 = jnp.pad(s2, ((0, pad), (0, 0)))
        a2 = jnp.pad(a2, ((0, pad), (0, 0)))

    # Split fc1's weight so the concat can be fused into two matmuls.
    w1 = params["w1"]
    w1s, w1a = w1[:state_dim], w1[state_dim:]
    w2 = params["w2"]
    if matmul_dtype != jnp.float32:
        w1s = w1s.astype(matmul_dtype)
        w1a = w1a.astype(matmul_dtype)
        w2 = w2.astype(matmul_dtype)
    b1, b2 = params["b1"], params["b2"]
    w3row = params["w3"].reshape(1, HIDDEN)          # (256,1) -> (1,256) row
    b3 = params["b3"].reshape(1, 1)

    grid = (B_pad // tb,)
    kernel = functools.partial(q_mlp_kernel, matmul_dtype=matmul_dtype)

    out = pl.pallas_call(
        kernel,
        out_shape=jax.ShapeDtypeStruct((B_pad, 1), jnp.float32),
        grid=grid,
        in_specs=[
            pl.BlockSpec((tb, state_dim), lambda i: (i, 0)),        # s tile
            pl.BlockSpec((tb, action_dim), lambda i: (i, 0)),       # a tile
            pl.BlockSpec((state_dim, HIDDEN), lambda i: (0, 0)),    # w1[:S]
            pl.BlockSpec((action_dim, HIDDEN), lambda i: (0, 0)),   # w1[S:]
            pl.BlockSpec((1, HIDDEN), lambda i: (0, 0)),            # b1
            pl.BlockSpec((HIDDEN, HIDDEN), lambda i: (0, 0)),       # w2
            pl.BlockSpec((1, HIDDEN), lambda i: (0, 0)),            # b2
            pl.BlockSpec((1, HIDDEN), lambda i: (0, 0)),            # w3 row
            pl.BlockSpec(memory_space=pltpu.MemorySpace.SMEM),      # b3 scalar
        ],
        out_specs=pl.BlockSpec((tb, 1), lambda i: (i, 0)),
        compiler_params=pltpu.CompilerParams(
            dimension_semantics=("parallel",)),
    )(s2, a2, w1s, w1a, b1, w2, b2, w3row, b3)

    return out[:B]


def init_q_params(key, state_dim, action_dim):
    """Matches nn.Linear's default U(-1/sqrt(fan_in), +1/sqrt(fan_in)) init.

    Weights are stored as (in, out) = transpose of torch's (out, in).
    """
    d_in = state_dim + action_dim
    k1, k2, k3, k4, k5, k6 = jax.random.split(key, 6)

    def uni(k, shape, fan_in):
        bound = 1.0 / jnp.sqrt(jnp.float32(fan_in))
        return jax.random.uniform(k, shape, jnp.float32, -bound, bound)

    return {
        "state_dim": state_dim,
        "action_dim": action_dim,
        "w1": uni(k1, (d_in, HIDDEN), d_in),
        "b1": uni(k2, (1, HIDDEN), d_in),
        "w2": uni(k3, (HIDDEN, HIDDEN), HIDDEN),
        "b2": uni(k4, (1, HIDDEN), HIDDEN),
        "w3": uni(k5, (HIDDEN, 1), HIDDEN),
        "b3": uni(k6, (1, 1), HIDDEN),
    }


def q_forward_ref(s, a, params):
    """Pure-JAX reference for correctness checking."""
    x = jnp.concatenate(
        [s.reshape(-1, params["state_dim"]),
         a.reshape(-1, params["action_dim"])], axis=-1)
    h1 = jnp.maximum(x @ params["w1"] + params["b1"], 0.0)
    h2 = jnp.maximum(h1 @ params["w2"] + params["b2"], 0.0)
    return h2 @ params["w3"] + params["b3"]


if __name__ == "__main__":
    key = jax.random.PRNGKey(0)
    kp, ks, ka = jax.random.split(key, 3)

    state_dim, action_dim, batch = 17, 6, 8
    params = init_q_params(kp, state_dim, action_dim)

    s = jax.random.normal(ks, (batch, state_dim), jnp.float32)
    a = jax.random.normal(ka, (batch, action_dim), jnp.float32)

    # f32 path (single batch tile).
    q = jax.block_until_ready(q_forward(s, a, params))
    q_ref = q_forward_ref(s, a, params)
    assert q.shape == (batch, 1), q.shape
    # Loose-ish tolerance: XLA's reference matmul and the in-kernel MXU matmul
    # may use different f32-on-MXU precision modes.
    assert jnp.allclose(q, q_ref, atol=1e-2, rtol=1e-2), (q, q_ref)

    # bf16 matmul-input fast path (v6e/v7x); bias/ReLU stay in f32.
    q_bf = jax.block_until_ready(
        q_forward(s, a, params, matmul_dtype=jnp.bfloat16))
    assert q_bf.shape == (batch, 1), q_bf.shape
    assert float(jnp.max(jnp.abs(q_bf - q_ref))) < 0.1

    # Multi-tile grid + batch-padding path (B not a multiple of the tile).
    b2 = 200
    s_big = jax.random.normal(ks, (b2, state_dim), jnp.float32)
    a_big = jax.random.normal(ka, (b2, action_dim), jnp.float32)
    q_big = jax.block_until_ready(q_forward(s_big, a_big, params, block_b=64))
    q_big_ref = q_forward_ref(s_big, a_big, params)
    assert q_big.shape == (b2, 1), q_big.shape
    assert jnp.allclose(q_big, q_big_ref, atol=1e-2, rtol=1e-2)

    print("KERNEL_OK")
</pallas_src>

<mosaic_0001>
module attributes {stable_mosaic.version = 11 : i64} {
  func.func @q_mlp_kernel(%arg0: i32, %arg1: memref<8x17xf32, #tpu.memory_space<vmem>>, %arg2: memref<8x6xf32, #tpu.memory_space<vmem>>, %arg3: memref<17x256xf32, #tpu.memory_space<vmem>>, %arg4: memref<6x256xf32, #tpu.memory_space<vmem>>, %arg5: memref<1x256xf32, #tpu.memory_space<vmem>>, %arg6: memref<256x256xf32, #tpu.memory_space<vmem>>, %arg7: memref<1x256xf32, #tpu.memory_space<vmem>>, %arg8: memref<1x256xf32, #tpu.memory_space<vmem>>, %arg9: memref<1x1xf32, #tpu.memory_space<smem>>, %arg10: memref<8x1xf32, #tpu.memory_space<vmem>>) attributes {dimension_semantics = [#tpu.dimension_semantics<parallel>], iteration_bounds = array<i64: 1>, scalar_prefetch = 0 : i64, scratch_operands = 0 : i64, tpu.core_type = #tpu.core_type<tc>, window_params = [{transform_indices = @transform_0, window_bounds = array<i64: 8, 17>}, {transform_indices = @transform_1, window_bounds = array<i64: 8, 6>}, {pipeline_mode = #tpu.pipeline_mode<synchronous>, transform_indices = @transform_2, window_bounds = array<i64: 17, 256>}, {pipeline_mode = #tpu.pipeline_mode<synchronous>, transform_indices = @transform_3, window_bounds = array<i64: 6, 256>}, {pipeline_mode = #tpu.pipeline_mode<synchronous>, transform_indices = @transform_4, window_bounds = array<i64: 1, 256>}, {pipeline_mode = #tpu.pipeline_mode<synchronous>, transform_indices = @transform_5, window_bounds = array<i64: 256, 256>}, {pipeline_mode = #tpu.pipeline_mode<synchronous>, transform_indices = @transform_6, window_bounds = array<i64: 1, 256>}, {pipeline_mode = #tpu.pipeline_mode<synchronous>, transform_indices = @transform_7, window_bounds = array<i64: 1, 256>}, {transform_indices = @transform_8, window_bounds = array<i64: 1, 1>}, {transform_indices = @transform_9, window_bounds = array<i64: 8, 1>}]} {
    %c0 = arith.constant 0 : index
    %c0_0 = arith.constant 0 : index
    %0 = vector.load %arg1[%c0, %c0_0] : memref<8x17xf32, #tpu.memory_space<vmem>>, vector<8x17xf32>
    %c0_1 = arith.constant 0 : index
    %c0_2 = arith.constant 0 : index
    %1 = vector.load %arg2[%c0_1, %c0_2] : memref<8x6xf32, #tpu.memory_space<vmem>>, vector<8x6xf32>
    %c0_3 = arith.constant 0 : index
    %c0_4 = arith.constant 0 : index
    %2 = vector.load %arg3[%c0_3, %c0_4] : memref<17x256xf32, #tpu.memory_space<vmem>>, vector<17x256xf32>
    %cst = arith.constant dense<0.000000e+00> : vector<8x256xf32>
    %3 = tpu.matmul %0, %2, %cst {dimension_numbers = #tpu.dot_dimension_numbers<[1], [0], [0], [1], [0, 0, 1, 1], [], []>} : vector<8x17xf32>, vector<17x256xf32>, vector<8x256xf32> -> vector<8x256xf32>
    %c0_5 = arith.constant 0 : index
    %c0_6 = arith.constant 0 : index
    %4 = vector.load %arg4[%c0_5, %c0_6] : memref<6x256xf32, #tpu.memory_space<vmem>>, vector<6x256xf32>
    %cst_7 = arith.constant dense<0.000000e+00> : vector<8x256xf32>
    %5 = tpu.matmul %1, %4, %cst_7 {dimension_numbers = #tpu.dot_dimension_numbers<[1], [0], [0], [1], [0, 0, 1, 1], [], []>} : vector<8x6xf32>, vector<6x256xf32>, vector<8x256xf32> -> vector<8x256xf32>
    %6 = arith.addf %3, %5 : vector<8x256xf32>
    %c0_8 = arith.constant 0 : index
    %c0_9 = arith.constant 0 : index
    %7 = vector.load %arg5[%c0_8, %c0_9] : memref<1x256xf32, #tpu.memory_space<vmem>>, vector<1x256xf32>
    %8 = vector.broadcast %7 : vector<1x256xf32> to vector<8x256xf32>
    %9 = arith.addf %6, %8 : vector<8x256xf32>
    %cst_10 = arith.constant 0.000000e+00 : f32
    %10 = vector.broadcast %cst_10 : f32 to vector<8x256xf32>
    %11 = arith.maximumf %9, %10 : vector<8x256xf32>
    %c0_11 = arith.constant 0 : index
    %c0_12 = arith.constant 0 : index
    %12 = vector.load %arg6[%c0_11, %c0_12] : memref<256x256xf32, #tpu.memory_space<vmem>>, vector<256x256xf32>
    %cst_13 = arith.constant dense<0.000000e+00> : vector<8x256xf32>
    %13 = tpu.matmul %11, %12, %cst_13 {dimension_numbers = #tpu.dot_dimension_numbers<[1], [0], [0], [1], [0, 0, 1, 1], [], []>} : vector<8x256xf32>, vector<256x256xf32>, vector<8x256xf32> -> vector<8x256xf32>
    %c0_14 = arith.constant 0 : index
    %c0_15 = arith.constant 0 : index
    %14 = vector.load %arg7[%c0_14, %c0_15] : memref<1x256xf32, #tpu.memory_space<vmem>>, vector<1x256xf32>
    %15 = vector.broadcast %14 : vector<1x256xf32> to vector<8x256xf32>
    %16 = arith.addf %13, %15 : vector<8x256xf32>
    %cst_16 = arith.constant 0.000000e+00 : f32
    %17 = vector.broadcast %cst_16 : f32 to vector<8x256xf32>
    %18 = arith.maximumf %16, %17 : vector<8x256xf32>
    %c0_17 = arith.constant 0 : index
    %c0_18 = arith.constant 0 : index
    %19 = vector.load %arg8[%c0_17, %c0_18] : memref<1x256xf32, #tpu.memory_space<vmem>>, vector<1x256xf32>
    %20 = vector.broadcast %19 : vector<1x256xf32> to vector<8x256xf32>
    %21 = arith.mulf %18, %20 : vector<8x256xf32>
    %cst_19 = arith.constant dense<0.000000e+00> : vector<8xf32>
    %22 = vector.multi_reduction <add>, %21, %cst_19 [1] : vector<8x256xf32> to vector<8xf32>
    %23 = vector.shape_cast %22 : vector<8xf32> to vector<8x1xf32>
    %c0_20 = arith.constant 0 : index
    %c0_21 = arith.constant 0 : index
    %24 = memref.load %arg9[%c0_20, %c0_21] : memref<1x1xf32, #tpu.memory_space<smem>>
    %25 = vector.broadcast %24 : f32 to vector<8x1xf32>
    %26 = arith.addf %23, %25 : vector<8x1xf32>
    %c0_22 = arith.constant 0 : index
    %c0_23 = arith.constant 0 : index
    %27 = vector.load %arg10[%c0_22, %c0_23] : memref<8x1xf32, #tpu.memory_space<vmem>>, vector<8x1xf32>
    tpu.vector_store %arg10[%c0_22, %c0_23], %26 {strides = array<i32>} : memref<8x1xf32, #tpu.memory_space<vmem>>, vector<8x1xf32>,
    return
  }
  func.func @transform_0(%arg0: i32) -> (i32, i32) {
    %c0_i32 = arith.constant 0 : i32
    %c0_i32_0 = arith.constant 0 : i32
    return %arg0, %c0_i32 : i32, i32
  }
  func.func @transform_1(%arg0: i32) -> (i32, i32) {
    %c0_i32 = arith.constant 0 : i32
    %c0_i32_0 = arith.constant 0 : i32
    return %arg0, %c0_i32 : i32, i32
  }
  func.func @transform_2(%arg0: i32) -> (i32, i32) {
    %c0_i32 = arith.constant 0 : i32
    %c0_i32_0 = arith.constant 0 : i32
    %c0_i32_1 = arith.constant 0 : i32
    return %c0_i32, %c0_i32_0 : i32, i32
  }
  func.func @transform_3(%arg0: i32) -> (i32, i32) {
    %c0_i32 = arith.constant 0 : i32
    %c0_i32_0 = arith.constant 0 : i32
    %c0_i32_1 = arith.constant 0 : i32
    return %c0_i32, %c0_i32_0 : i32, i32
  }
  func.func @transform_4(%arg0: i32) -> (i32, i32) {
    %c0_i32 = arith.constant 0 : i32
    %c0_i32_0 = arith.constant 0 : i32
    %c0_i32_1 = arith.constant 0 : i32
    return %c0_i32, %c0_i32_0 : i32, i32
  }
  func.func @transform_5(%arg0: i32) -> (i32, i32) {
    %c0_i32 = arith.constant 0 : i32
    %c0_i32_0 = arith.constant 0 : i32
    %c0_i32_1 = arith.constant 0 : i32
    return %c0_i32, %c0_i32_0 : i32, i32
  }
  func.func @transform_6(%arg0: i32) -> (i32, i32) {
    %c0_i32 = arith.constant 0 : i32
    %c0_i32_0 = arith.constant 0 : i32
    %c0_i32_1 = arith.constant 0 : i32
    return %c0_i32, %c0_i32_0 : i32, i32
  }
  func.func @transform_7(%arg0: i32) -> (i32, i32) {
    %c0_i32 = arith.constant 0 : i32
    %c0_i32_0 = arith.constant 0 : i32
    %c0_i32_1 = arith.constant 0 : i32
    return %c0_i32, %c0_i32_0 : i32, i32
  }
  func.func @transform_8(%arg0: i32) -> (i32, i32) {
    %c0_i32 = arith.constant 0 : i32
    %c0_i32_0 = arith.constant 0 : i32
    %c0_i32_1 = arith.constant 0 : i32
    return %c0_i32, %c0_i32_0 : i32, i32
  }
  func.func @transform_9(%arg0: i32) -> (i32, i32) {
    %c0_i32 = arith.constant 0 : i32
    %c0_i32_0 = arith.constant 0 : i32
    return %arg0, %c0_i32 : i32, i32
  }
}

</mosaic_0001>

<llo_original>
// kernel: tpu_custom_call.1
$region0: #{tpu_custom_call.1}
  #allocation0 [shape = 'u32[]', space=smem, size = 0x4, offset = 0x4, fixed_abs, tag = 'smem constant byte address 0x4 - core index']
  #allocation1 [shape = 'u32[144,128]{1,0:T(1,128)}', space=vmem, size = 0x12000, scoped, tag = 'internal scratch']
  #allocation2 [shape = 'f32[1,1]{1,0:T(1,128)S(6)}', space=smem, size = 0x200, scoped, tag = 'scoped memory for tpu_custom_call.1']
  %s0 = inlined_call_operand.hbm [shape: f32[8,17], index: 0, kind: input, shape index: {}]
  %s1 = inlined_call_operand.hbm [shape: f32[8,6], index: 1, kind: input, shape index: {}]
  %s2 = inlined_call_operand.hbm [shape: f32[17,256], index: 2, kind: input, shape index: {}]
  %s3 = inlined_call_operand.hbm [shape: f32[6,256], index: 3, kind: input, shape index: {}]
  %s4 = inlined_call_operand.vmem [shape: f32[1,256], index: 4, kind: input, shape index: {}]
  %s5 = inlined_call_operand.hbm [shape: f32[256,256], index: 5, kind: input, shape index: {}]
  %s6 = inlined_call_operand.vmem [shape: f32[1,256], index: 6, kind: input, shape index: {}]
  %s7 = inlined_call_operand.vmem [shape: f32[1,256], index: 7, kind: input, shape index: {}]
  %s8 = inlined_call_operand.<no memory space> [shape: f32[1,1], index: 8, kind: input, shape index: {}]
  %s9 = inlined_call_operand.vmem [shape: f32[8,1], index: 9, kind: output, shape index: {}]
  %s10 = sld [smem:[#allocation0]]
  $region66: #{tpu_custom_call.1} parent=0
    _
  %s12 = ssub.s32 1, %s10
  %s13 = scalar_select 0, %s12, %s10
  %14 = sst [smem:[#allocation2]] %s8
  $region1: #{tpu_custom_call.1} parent=0
    #allocation3 [shape = 'u8[4096]{0}', space=vmem, size = 0x1000, scoped, tag = 'input window, operand 0, single buffered']
    #allocation4 [shape = 's32[1]{0}', space=sflag, size = 0x4, scoped, tag = 'scoped memory for tpu_custom_call.1']
    #allocation5 [shape = 'u8[4096]{0}', space=vmem, size = 0x1000, scoped, tag = 'input window, operand 1, single buffered']
    #allocation6 [shape = 's32[1]{0}', space=sflag, size = 0x4, scoped, tag = 'scoped memory for tpu_custom_call.1']
    #allocation7 [shape = 'u8[24576]{0}', space=vmem, size = 0x6000, scoped, tag = 'input window, operand 2, single buffered']
    #allocation8 [shape = 'u8[8192]{0}', space=vmem, size = 0x2000, scoped, tag = 'input window, operand 3, single buffered']
    #allocation9 [shape = 's32[1]{0}', space=sflag, size = 0x4, scoped, tag = 'scoped memory for tpu_custom_call.1']
    #allocation10 [shape = 'u8[262144]{0}', space=vmem, size = 0x40000, scoped, tag = 'input window, operand 5, single buffered']
    %15 = vsyncpa [#allocation4], 0
    %16 = vsyncpa [#allocation6], 0
    %17 = vsyncpa [#allocation9], 0
    // Predicated region
    $region2: #{tpu_custom_call.1} parent=1 // pred_check
      _
    $region3: #{tpu_custom_call.1} parent=1 // pred_check_branch
      %19 = sbr.rel (0) target = $region5
    $region4: #{tpu_custom_call.1} parent=1 // pred_region
      %s21 = ssub.s32 128, 128
      %22 = vsyncadd [#allocation4], %s21
      %s24 = sshll.u32 [#allocation3], 4
      %s25 = int_to_ptr.vmem [resolvable:$true] %s24
      %27 = dma.hbm_to_vmem [thread:$0]  %s0, 128, %s25, [#allocation4]
    $region5: #{tpu_custom_call.1} parent=1 // pred_fallthru
      _
    // Predicated region
    $region6: #{tpu_custom_call.1} parent=1 // pred_check
      _
    $region7: #{tpu_custom_call.1} parent=1 // pred_check_branch
      %29 = sbr.rel (0) target = $region9
    $region8: #{tpu_custom_call.1} parent=1 // pred_region
      %s31 = ssub.s32 128, 128
      %32 = vsyncadd [#allocation6], %s31
      %s34 = sshll.u32 [#allocation5], 4
      %s35 = int_to_ptr.vmem [resolvable:$true] %s34
      %37 = dma.hbm_to_vmem [thread:$0]  %s1, 128, %s35, [#allocation6]
    $region9: #{tpu_custom_call.1} parent=1 // pred_fallthru
      _
    // Predicated region
    $region10: #{tpu_custom_call.1} parent=1 // pred_check
      _
    $region11: #{tpu_custom_call.1} parent=1 // pred_check_branch
      %39 = sbr.rel (0) target = $region13
    $region12: #{tpu_custom_call.1} parent=1 // pred_region
      %s41 = ssub.s32 768, 768
      %42 = vsyncadd [#allocation6], %s41
      %s43 = sshll.u32 [#allocation7], 4
      %s44 = int_to_ptr.vmem [resolvable:$true] %s43
      %49 = dma.hbm_to_vmem [thread:$0]  %s2, 768, %s44, [#allocation6], 256, 256, 16
    $region13: #{tpu_custom_call.1} parent=1 // pred_fallthru
      _
    // Predicated region
    $region14: #{tpu_custom_call.1} parent=1 // pred_check
      _
    $region15: #{tpu_custom_call.1} parent=1 // pred_check_branch
      %51 = sbr.rel (0) target = $region17
    $region16: #{tpu_custom_call.1} parent=1 // pred_region
      %s53 = ssub.s32 256, 256
      %54 = vsyncadd [#allocation9], %s53
      %s56 = sshll.u32 [#allocation8], 4
      %s57 = int_to_ptr.vmem [resolvable:$true] %s56
      %59 = dma.hbm_to_vmem [thread:$0]  %s3, 256, %s57, [#allocation9]
    $region17: #{tpu_custom_call.1} parent=1 // pred_fallthru
      _
    // Predicated region
    $region18: #{tpu_custom_call.1} parent=1 // pred_check
      _
    $region19: #{tpu_custom_call.1} parent=1 // pred_check_branch
      %61 = sbr.rel (0) target = $region21
    $region20: #{tpu_custom_call.1} parent=1 // pred_region
      _
    $region21: #{tpu_custom_call.1} parent=1 // pred_fallthru
      _
    // Predicated region
    $region22: #{tpu_custom_call.1} parent=1 // pred_check
      _
    $region23: #{tpu_custom_call.1} parent=1 // pred_check_branch
      %63 = sbr.rel (0) target = $region25
    $region24: #{tpu_custom_call.1} parent=1 // pred_region
      %s65 = ssub.s32 8192, 8192
      %66 = vsyncadd [#allocation9], %s65
      %s67 = sshll.u32 [#allocation10], 4
      %s68 = int_to_ptr.vmem [resolvable:$true] %s67
      %73 = dma.hbm_to_vmem [thread:$0]  %s5, 8192, %s68, [#allocation9], 256, 256, 16
    $region25: #{tpu_custom_call.1} parent=1 // pred_fallthru
      _
    // Predicated region
    $region26: #{tpu_custom_call.1} parent=1 // pred_check
      _
    $region27: #{tpu_custom_call.1} parent=1 // pred_check_branch
      %75 = sbr.rel (0) target = $region29
    $region28: #{tpu_custom_call.1} parent=1 // pred_region
      _
    $region29: #{tpu_custom_call.1} parent=1 // pred_fallthru
      _
    // Predicated region
    $region30: #{tpu_custom_call.1} parent=1 // pred_check
      _
    $region31: #{tpu_custom_call.1} parent=1 // pred_check_branch
      %77 = sbr.rel (0) target = $region33
    $region32: #{tpu_custom_call.1} parent=1 // pred_region
      _
    $region33: #{tpu_custom_call.1} parent=1 // pred_fallthru
      _
    // Predicated region
    $region34: #{tpu_custom_call.1} parent=1 // pred_check
      _
    $region35: #{tpu_custom_call.1} parent=1 // pred_check_branch
      %79 = sbr.rel (0) target = $region37
    $region36: #{tpu_custom_call.1} parent=1 // pred_region
      _
    $region37: #{tpu_custom_call.1} parent=1 // pred_fallthru
      _
    // Predicated region
    $region38: #{tpu_custom_call.1} parent=1 // pred_check
      _
    $region39: #{tpu_custom_call.1} parent=1 // pred_check_branch
      %81 = sbr.rel (0) target = $region41
    $region40: #{tpu_custom_call.1} parent=1 // pred_region
      %82 = dma.done [#allocation4], 128
    $region41: #{tpu_custom_call.1} parent=1 // pred_fallthru
      _
    // Predicated region
    $region42: #{tpu_custom_call.1} parent=1 // pred_check
      _
    $region43: #{tpu_custom_call.1} parent=1 // pred_check_branch
      %84 = sbr.rel (0) target = $region45
    $region44: #{tpu_custom_call.1} parent=1 // pred_region
      %85 = dma.done [#allocation6], 128
    $region45: #{tpu_custom_call.1} parent=1 // pred_fallthru
      _
    // Predicated region
    $region46: #{tpu_custom_call.1} parent=1 // pred_check
      _
    $region47: #{tpu_custom_call.1} parent=1 // pred_check_branch
      %87 = sbr.rel (0) target = $region49
    $region48: #{tpu_custom_call.1} parent=1 // pred_region
      %88 = dma.done [#allocation6], 768
    $region49: #{tpu_custom_call.1} parent=1 // pred_fallthru
      _
    // Predicated region
    $region50: #{tpu_custom_call.1} parent=1 // pred_check
      _
    $region51: #{tpu_custom_call.1} parent=1 // pred_check_branch
      %90 = sbr.rel (0) target = $region53
    $region52: #{tpu_custom_call.1} parent=1 // pred_region
      %91 = dma.done [#allocation9], 256
    $region53: #{tpu_custom_call.1} parent=1 // pred_fallthru
      _
    // Predicated region
    $region54: #{tpu_custom_call.1} parent=1 // pred_check
      _
    $region55: #{tpu_custom_call.1} parent=1 // pred_check_branch
      %93 = sbr.rel (0) target = $region57
    $region56: #{tpu_custom_call.1} parent=1 // pred_region
      %94 = dma.done [#allocation9], 8192
    $region57: #{tpu_custom_call.1} parent=1 // pred_fallthru
      _
    %v95 = vld [vmem:[#allocation3] sm:$0xff]
    %v96 = vld [vmem:[#allocation5] sm:$0xff]
    %v97 = vld [vmem:[#allocation7] sm:$0xff]
    %v98 = vld [vmem:[#allocation7 + $0x8] sm:$0xff]
    %v99 = vld [vmem:[#allocation7 + $0x10] sm:$0xff]
    %v100 = vld [vmem:[#allocation7 + $0x18] sm:$0xff]
    %v101 = vld [vmem:[#allocation7 + $0x20] sm:$0x1]
    %v102 = vld [vmem:[#allocation7 + $0x28] sm:$0x1]
    %v103 = vld [vmem:[#allocation8] sm:$0x3f]
    %v104 = vld [vmem:[#allocation8 + $0x8] sm:$0x3f]
    %vm105 = vcmask 48128
    %v107 = vsel %vm105, %v96, 0
    %vm109 = vcmask 1045504
    %v111 = vsel %vm109, %v103, 0
    %v114 = vsel %vm109, %v104, 0
    %116 = vmatprep.subr.mxu0 0.0
    %117 = vmatpush1.msra.mxu0 0.0
    %118 = vmatprep.subr.mxu0 0.0
    %119 = vmatpush1.msra.mxu0 0.0
    %120 = vmatprep.subr.mxu0 0.0
    %121 = vmatpush1.msra.mxu0 0.0
    %122 = vmatprep.subr.mxu0 0.0
    %123 = vmatpush1.msra.mxu0 0.0
    %124 = vmatprep.subr.mxu0 0.0
    %125 = vmatpush1.msra.mxu0 0.0
    %126 = vmatprep.subr.mxu0 0.0
    %127 = vmatpush1.msra.mxu0 0.0
    %128 = vmatprep.subr.mxu0 0.0
    %129 = vmatpush1.msra.mxu0 0.0
    %130 = vmatprep.subr.mxu0 0.0
    %131 = vmatpush1.msra.mxu0 0.0
    %132 = vmatprep.subr.mxu0 0.0
    %133 = vmatpush1.msra.mxu0 0.0
    %134 = vmatprep.subr.mxu0 0.0
    %135 = vmatpush1.msra.mxu0 0.0
    %136 = vmatprep.subr.mxu0 0.0
    %137 = vmatpush1.msra.mxu0 0.0
    %138 = vmatprep.subr.mxu0 0.0
    %139 = vmatpush1.msra.mxu0 0.0
    %140 = vmatprep.subr.mxu0 0.0
    %141 = vmatpush1.msra.mxu0 0.0
    %142 = vmatprep.subr.mxu0 0.0
    %143 = vmatpush1.msra.mxu0 0.0
    %144 = vmatprep.subr.mxu0 0.0
    %145 = vmatpush1.msra.mxu0 0.0
    %146 = vmatprep.subr.mxu0 %v114
    %147 = vmatpush1.msra.mxu0 %v111
    %148 = vmatprep.subr.mxu0 0.0
    %149 = vmatpush2.msra.mxu0 0.0
    %150 = vmatprep.subr.mxu0 0.0
    %151 = vmatpush2.msra.mxu0 0.0
    %152 = vmatprep.subr.mxu0 0.0
    %153 = vmatpush2.msra.mxu0 0.0
    %154 = vmatprep.subr.mxu0 0.0
    %155 = vmatpush2.msra.mxu0 0.0
    %156 = vmatprep.subr.mxu0 0.0
    %157 = vmatpush2.msra.mxu0 0.0
    %158 = vmatprep.subr.mxu0 0.0
    %159 = vmatpush2.msra.mxu0 0.0
    %160 = vmatprep.subr.mxu0 0.0
    %161 = vmatpush2.msra.mxu0 0.0
    %162 = vmatprep.subr.mxu0 0.0
    %163 = vmatpush2.msra.mxu0 0.0
    %164 = vmatprep.subr.mxu0 0.0
    %165 = vmatpush2.msra.mxu0 0.0
    %166 = vmatprep.subr.mxu0 0.0
    %167 = vmatpush2.msra.mxu0 0.0
    %168 = vmatprep.subr.mxu0 0.0
    %169 = vmatpush2.msra.mxu0 0.0
    %170 = vmatprep.subr.mxu0 0.0
    %171 = vmatpush2.msra.mxu0 0.0
    %172 = vmatprep.subr.mxu0 0.0
    %173 = vmatpush2.msra.mxu0 0.0
    %174 = vmatprep.subr.mxu0 0.0
    %175 = vmatpush2.msra.mxu0 0.0
    %176 = vmatprep.subr.mxu0 0.0
    %177 = vmatpush2.msra.mxu0 0.0
    %178 = vmatprep.subr.mxu0 0.0
    %179 = vmatpush2.msra.mxu0 0.0
    %180 = vmatprep.mubr.f32.mxu0 0.0
    %181 = vmatmul.mubr.f32.gmra.mxu0 %v107
    %v182 = vpop.f32.mrf.mxu0
    %v183 = vadd.f32 0.0, %v182
    %v184 = vpop.f32.mrf.mxu0
    %v185 = vadd.f32 0.0, %v184
    %186 = vdwg.mxu0
    %vm187 = vcmask 138240
    %v189 = vsel %vm187, %v95, 0
    %vm191 = vcmask 1040384
    %v193 = vsel %vm191, %v101, 0
    %v196 = vsel %vm191, %v102, 0
    %198 = vmatprep.subr.mxu0 0.0
    %199 = vmatpush1.msra.mxu0 0.0
    %200 = vmatprep.subr.mxu0 0.0
    %201 = vmatpush1.msra.mxu0 0.0
    %202 = vmatprep.subr.mxu0 0.0
    %203 = vmatpush1.msra.mxu0 0.0
    %204 = vmatprep.subr.mxu0 0.0
    %205 = vmatpush1.msra.mxu0 0.0
    %206 = vmatprep.subr.mxu0 0.0
    %207 = vmatpush1.msra.mxu0 0.0
    %208 = vmatprep.subr.mxu0 0.0
    %209 = vmatpush1.msra.mxu0 0.0
    %210 = vmatprep.subr.mxu0 0.0
    %211 = vmatpush1.msra.mxu0 0.0
    %212 = vmatprep.subr.mxu0 0.0
    %213 = vmatpush1.msra.mxu0 0.0
    %214 = vmatprep.subr.mxu0 0.0
    %215 = vmatpush1.msra.mxu0 0.0
    %216 = vmatprep.subr.mxu0 0.0
    %217 = vmatpush1.msra.mxu0 0.0
    %218 = vmatprep.subr.mxu0 0.0
    %219 = vmatpush1.msra.mxu0 0.0
    %220 = vmatprep.subr.mxu0 0.0
    %221 = vmatpush1.msra.mxu0 0.0
    %222 = vmatprep.subr.mxu0 0.0
    %223 = vmatpush1.msra.mxu0 0.0
    %224 = vmatprep.subr.mxu0 %v196
    %225 = vmatpush1.msra.mxu0 %v193
    %226 = vmatprep.subr.mxu0 %v100
    %227 = vmatpush1.msra.mxu0 %v99
    %228 = vmatprep.subr.mxu0 %v98
    %229 = vmatpush1.msra.mxu0 %v97
    %230 = vmatprep.subr.mxu0 0.0
    %231 = vmatpush2.msra.mxu0 0.0
    %232 = vmatprep.subr.mxu0 0.0
    %233 = vmatpush2.msra.mxu0 0.0
    %234 = vmatprep.subr.mxu0 0.0
    %235 = vmatpush2.msra.mxu0 0.0
    %236 = vmatprep.subr.mxu0 0.0
    %237 = vmatpush2.msra.mxu0 0.0
    %238 = vmatprep.subr.mxu0 0.0
    %239 = vmatpush2.msra.mxu0 0.0
    %240 = vmatprep.subr.mxu0 0.0
    %241 = vmatpush2.msra.mxu0 0.0
    %242 = vmatprep.subr.mxu0 0.0
    %243 = vmatpush2.msra.mxu0 0.0
    %244 = vmatprep.subr.mxu0 0.0
    %245 = vmatpush2.msra.mxu0 0.0
    %246 = vmatprep.subr.mxu0 0.0
    %247 = vmatpush2.msra.mxu0 0.0
    %248 = vmatprep.subr.mxu0 0.0
    %249 = vmatpush2.msra.mxu0 0.0
    %250 = vmatprep.subr.mxu0 0.0
    %251 = vmatpush2.msra.mxu0 0.0
    %252 = vmatprep.subr.mxu0 0.0
    %253 = vmatpush2.msra.mxu0 0.0
    %254 = vmatprep.subr.mxu0 0.0
    %255 = vmatpush2.msra.mxu0 0.0
    %256 = vmatprep.subr.mxu0 0.0
    %257 = vmatpush2.msra.mxu0 0.0
    %258 = vmatprep.subr.mxu0 0.0
    %259 = vmatpush2.msra.mxu0 0.0
    %260 = vmatprep.subr.mxu0 0.0
    %261 = vmatpush2.msra.mxu0 0.0
    %262 = vmatprep.mubr.f32.mxu0 0.0
    %263 = vmatmul.mubr.f32.gmra.mxu0 %v189
    %v264 = vpop.f32.mrf.mxu0
    %v265 = vadd.f32 %v183, %v264
    %v266 = vpop.f32.mrf.mxu0
    %v267 = vadd.f32 %v185, %v266
    %268 = vdwg.mxu0
    %v269 = vld [vmem:[%s4] sm:$0x3]
    %v271 = vlaneseq
    %v272 = vshrl.u32 %v271, 7
    %v273 = vsub.s32 0, %v272
    %v274 = vrot.slane %v269, %v273
    %v275 = vlaneseq
    %v276 = vshrl.u32 %v275, 7
    %v277 = vsub.s32 1, %v276
    %v278 = vrot.slane %v269, %v277
    %v281 = vadd.f32 %v265, %v274
    %v282 = vadd.f32 %v267, %v278
    %v283 = vmax.f32 %v281, 0.0
    %v284 = vmax.f32 %v282, 0.0
    %v285 = vld [vmem:[#allocation10] sm:$0xff]
    %v286 = vld [vmem:[#allocation10 + $0x8] sm:$0xff]
    %v287 = vld [vmem:[#allocation10 + $0x10] sm:$0xff]
    %v288 = vld [vmem:[#allocation10 + $0x18] sm:$0xff]
    %v289 = vld [vmem:[#allocation10 + $0x20] sm:$0xff]
    %v290 = vld [vmem:[#allocation10 + $0x28] sm:$0xff]
    %v291 = vld [vmem:[#allocation10 + $0x30] sm:$0xff]
    %v292 = vld [vmem:[#allocation10 + $0x38] sm:$0xff]
    %v293 = vld [vmem:[#allocation10 + $0x40] sm:$0xff]
    %v294 = vld [vmem:[#allocation10 + $0x48] sm:$0xff]
    %v295 = vld [vmem:[#allocation10 + $0x50] sm:$0xff]
    %v296 = vld [vmem:[#allocation10 + $0x58] sm:$0xff]
    %v297 = vld [vmem:[#allocation10 + $0x60] sm:$0xff]
    %v298 = vld [vmem:[#allocation10 + $0x68] sm:$0xff]
    %v299 = vld [vmem:[#allocation10 + $0x70] sm:$0xff]
    %v300 = vld [vmem:[#allocation10 + $0x78] sm:$0xff]
    %v301 = vld [vmem:[#allocation10 + $0x80] sm:$0xff]
    %v302 = vld [vmem:[#allocation10 + $0x88] sm:$0xff]
    %v303 = vld [vmem:[#allocation10 + $0x90] sm:$0xff]
    %v304 = vld [vmem:[#allocation10 + $0x98] sm:$0xff]
    %v305 = vld [vmem:[#allocation10 + $0xa0] sm:$0xff]
    %v306 = vld [vmem:[#allocation10 + $0xa8] sm:$0xff]
    %v307 = vld [vmem:[#allocation10 + $0xb0] sm:$0xff]
    %v308 = vld [vmem:[#allocation10 + $0xb8] sm:$0xff]
    %v309 = vld [vmem:[#allocation10 + $0xc0] sm:$0xff]
    %v310 = vld [vmem:[#allocation10 + $0xc8] sm:$0xff]
    %v311 = vld [vmem:[#allocation10 + $0xd0] sm:$0xff]
    %v312 = vld [vmem:[#allocation10 + $0xd8] sm:$0xff]
    %v313 = vld [vmem:[#allocation10 + $0xe0] sm:$0xff]
    %v314 = vld [vmem:[#allocation10 + $0xe8] sm:$0xff]
    %v315 = vld [vmem:[#allocation10 + $0xf0] sm:$0xff]
    %v316 = vld [vmem:[#allocation10 + $0xf8] sm:$0xff]
    %v317 = vld [vmem:[#allocation10 + $0x100] sm:$0xff]
    %v318 = vld [vmem:[#allocation10 + $0x108] sm:$0xff]
    %v319 = vld [vmem:[#allocation10 + $0x110] sm:$0xff]
    %v320 = vld [vmem:[#allocation10 + $0x118] sm:$0xff]
    %v321 = vld [vmem:[#allocation10 + $0x120] sm:$0xff]
    %v322 = vld [vmem:[#allocation10 + $0x128] sm:$0xff]
    %v323 = vld [vmem:[#allocation10 + $0x130] sm:$0xff]
    %v324 = vld [vmem:[#allocation10 + $0x138] sm:$0xff]
    %v325 = vld [vmem:[#allocation10 + $0x140] sm:$0xff]
    %v326 = vld [vmem:[#allocation10 + $0x148] sm:$0xff]
    %v327 = vld [vmem:[#allocation10 + $0x150] sm:$0xff]
    %v328 = vld [vmem:[#allocation10 + $0x158] sm:$0xff]
    %v329 = vld [vmem:[#allocation10 + $0x160] sm:$0xff]
    %v330 = vld [vmem:[#allocation10 + $0x168] sm:$0xff]
    %v331 = vld [vmem:[#allocation10 + $0x170] sm:$0xff]
    %v332 = vld [vmem:[#allocation10 + $0x178] sm:$0xff]
    %v333 = vld [vmem:[#allocation10 + $0x180] sm:$0xff]
    %v334 = vld [vmem:[#allocation10 + $0x188] sm:$0xff]
    %v335 = vld [vmem:[#allocation10 + $0x190] sm:$0xff]
    %v336 = vld [vmem:[#allocation10 + $0x198] sm:$0xff]
    %v337 = vld [vmem:[#allocation10 + $0x1a0] sm:$0xff]
    %v338 = vld [vmem:[#allocation10 + $0x1a8] sm:$0xff]
    %v339 = vld [vmem:[#allocation10 + $0x1b0] sm:$0xff]
    %v340 = vld [vmem:[#allocation10 + $0x1b8] sm:$0xff]
    %v341 = vld [vmem:[#allocation10 + $0x1c0] sm:$0xff]
    %v342 = vld [vmem:[#allocation10 + $0x1c8] sm:$0xff]
    %v343 = vld [vmem:[#allocation10 + $0x1d0] sm:$0xff]
    %v344 = vld [vmem:[#allocation10 + $0x1d8] sm:$0xff]
    %v345 = vld [vmem:[#allocation10 + $0x1e0] sm:$0xff]
    %v346 = vld [vmem:[#allocation10 + $0x1e8] sm:$0xff]
    %v347 = vld [vmem:[#allocation10 + $0x1f0] sm:$0xff]
    %v348 = vld [vmem:[#allocation10 + $0x1f8] sm:$0xff]
    %v349 = vld [vmem:[%s6] sm:$0x3]
    %v351 = vlaneseq
    %v352 = vshrl.u32 %v351, 7
    %v353 = vsub.s32 0, %v352
    %v354 = vrot.slane %v349, %v353
    %v355 = vlaneseq
    %v356 = vshrl.u32 %v355, 7
    %v357 = vsub.s32 1, %v356
    %v358 = vrot.slane %v349, %v357
    %361 = vmatprep.subr.mxu0 %v316
    %362 = vmatpush1.msra.mxu0 %v315
    %363 = vmatprep.subr.mxu0 %v314
    %364 = vmatpush1.msra.mxu0 %v313
    %365 = vmatprep.subr.mxu0 %v312
    %366 = vmatpush1.msra.mxu0 %v311
    %367 = vmatprep.subr.mxu0 %v310
    %368 = vmatpush1.msra.mxu0 %v309
    %369 = vmatprep.subr.mxu0 %v308
    %370 = vmatpush1.msra.mxu0 %v307
    %371 = vmatprep.subr.mxu0 %v306
    %372 = vmatpush1.msra.mxu0 %v305
    %373 = vmatprep.subr.mxu0 %v304
    %374 = vmatpush1.msra.mxu0 %v303
    %375 = vmatprep.subr.mxu0 %v302
    %376 = vmatpush1.msra.mxu0 %v301
    %377 = vmatprep.subr.mxu0 %v300
    %378 = vmatpush1.msra.mxu0 %v299
    %379 = vmatprep.subr.mxu0 %v298
    %380 = vmatpush1.msra.mxu0 %v297
    %381 = vmatprep.subr.mxu0 %v296
    %382 = vmatpush1.msra.mxu0 %v295
    %383 = vmatprep.subr.mxu0 %v294
    %384 = vmatpush1.msra.mxu0 %v293
    %385 = vmatprep.subr.mxu0 %v292
    %386 = vmatpush1.msra.mxu0 %v291
    %387 = vmatprep.subr.mxu0 %v290
    %388 = vmatpush1.msra.mxu0 %v289
    %389 = vmatprep.subr.mxu0 %v288
    %390 = vmatpush1.msra.mxu0 %v287
    %391 = vmatprep.subr.mxu0 %v286
    %392 = vmatpush1.msra.mxu0 %v285
    %393 = vmatprep.subr.mxu0 %v348
    %394 = vmatpush2.msra.mxu0 %v347
    %395 = vmatprep.subr.mxu0 %v346
    %396 = vmatpush2.msra.mxu0 %v345
    %397 = vmatprep.subr.mxu0 %v344
    %398 = vmatpush2.msra.mxu0 %v343
    %399 = vmatprep.subr.mxu0 %v342
    %400 = vmatpush2.msra.mxu0 %v341
    %401 = vmatprep.subr.mxu0 %v340
    %402 = vmatpush2.msra.mxu0 %v339
    %403 = vmatprep.subr.mxu0 %v338
    %404 = vmatpush2.msra.mxu0 %v337
    %405 = vmatprep.subr.mxu0 %v336
    %406 = vmatpush2.msra.mxu0 %v335
    %407 = vmatprep.subr.mxu0 %v334
    %408 = vmatpush2.msra.mxu0 %v333
    %409 = vmatprep.subr.mxu0 %v332
    %410 = vmatpush2.msra.mxu0 %v331
    %411 = vmatprep.subr.mxu0 %v330
    %412 = vmatpush2.msra.mxu0 %v329
    %413 = vmatprep.subr.mxu0 %v328
    %414 = vmatpush2.msra.mxu0 %v327
    %415 = vmatprep.subr.mxu0 %v326
    %416 = vmatpush2.msra.mxu0 %v325
    %417 = vmatprep.subr.mxu0 %v324
    %418 = vmatpush2.msra.mxu0 %v323
    %419 = vmatprep.subr.mxu0 %v322
    %420 = vmatpush2.msra.mxu0 %v321
    %421 = vmatprep.subr.mxu0 %v320
    %422 = vmatpush2.msra.mxu0 %v319
    %423 = vmatprep.subr.mxu0 %v318
    %424 = vmatpush2.msra.mxu0 %v317
    %425 = vmatprep.mubr.f32.mxu0 %v284
    %426 = vmatmul.mubr.f32.gmra.mxu0 %v283
    %v427 = vpop.f32.mrf.mxu0
    %v428 = vadd.f32 %v354, %v427
    %v429 = vpop.f32.mrf.mxu0
    %v430 = vadd.f32 %v358, %v429
    %431 = vdwg.mxu0
    %v432 = vmax.f32 %v428, 0.0
    %v433 = vmax.f32 %v430, 0.0
    %v434 = vld [vmem:[%s7] sm:$0x3]
    %v436 = vlaneseq
    %v437 = vshrl.u32 %v436, 7
    %v438 = vsub.s32 0, %v437
    %v439 = vrot.slane %v434, %v438
    %v440 = vlaneseq
    %v441 = vshrl.u32 %v440, 7
    %v442 = vsub.s32 1, %v441
    %v443 = vrot.slane %v434, %v442
    %v446 = vmul.f32 %v432, %v439
    %v447 = vmul.f32 %v433, %v443
    %v448 = vadd.f32 %v446, %v447
    %449 = vadd.xlane.f32.xlu0 %v448
    %v450 = vpop.xlane.xlu0 %449
    %s451 = sld [smem:[#allocation2]]
    %v452 = vstv %s451
    %v453 = vadd.f32 %v450, %v452
    %vm454 = vcmask 7168
    %455 = vst.msk [vmem:[%s9] sm:$0xff] %vm454, %v453
    // Predicated region
    $region58: #{tpu_custom_call.1} parent=1 // pred_check
      _
    $region59: #{tpu_custom_call.1} parent=1 // pred_check_branch
      %457 = sbr.rel (0) target = $region61
    $region60: #{tpu_custom_call.1} parent=1 // pred_region
      _
    $region61: #{tpu_custom_call.1} parent=1 // pred_fallthru
      _
    // Predicated region
    $region62: #{tpu_custom_call.1} parent=1 // pred_check
      _
    $region63: #{tpu_custom_call.1} parent=1 // pred_check_branch
      %459 = sbr.rel (0) target = $region65
    $region64: #{tpu_custom_call.1} parent=1 // pred_region
      _
    $region65: #{tpu_custom_call.1} parent=1 // pred_fallthru
      _
    %460 = vsyncpa [#allocation4], 1
    %461 = vsyncpa [#allocation6], 1
    %462 = vsyncpa [#allocation9], 1

</llo_original>
